<compile_context>
chip_gen: v7x
topology: tpu7x:2x2x1
jax: 0.10.0
libtpu: 0.0.40
codegen_flags: <defaults>
</compile_context>

<pallas_src>
import jax
import jax.numpy as jnp
from jax import lax
from jax.experimental import pallas as pl
from jax.experimental.pallas import tpu as pltpu

EPSILON = 1e-6


# --------------------------------------------------------------------------
# Small helpers
# --------------------------------------------------------------------------
def _round_up(n, m):
    return -(-n // m) * m


def _physical_vmem_bytes():
    """Best-effort physical VMEM per TensorCore; conservative fallback."""
    try:
        info = pltpu.get_tpu_info()
        for name in ("vmem_capacity_bytes", "vmem_size_bytes", "vmem_bytes"):
            v = getattr(info, name, None)
            if v:
                return int(v)
    except Exception:
        pass
    return 64 << 20  # v7x-sized fallback (safe everywhere)


def _vmem_cap_bytes():
    """Per-generation scoped-VMEM cap: generous on v5e/v6e (128 MiB physical),
    conservative on v7x (64 MiB physical)."""
    phys = _physical_vmem_bytes()
    return (96 << 20) if phys >= (128 << 20) else (32 << 20)


def _choose_batch_tile(B, per_row_bytes, tile_budget_bytes, block_b):
    """Largest batch tile that fits the VMEM budget, with >=2 even grid steps
    (v7x megacore) whenever the batch allows it."""
    if B % 8 != 0:
        return B  # single full-batch block satisfies the (8,128) rule
    tb_max = max(8, (max(tile_budget_bytes, 8 * per_row_bytes)
                     // per_row_bytes) // 8 * 8)
    if block_b is not None:
        tb_max = min(tb_max, max(8, _round_up(block_b, 8)))
    tb = min(tb_max, B)
    if B >= 16:
        steps = max(2, pl.cdiv(B, tb))   # never leave a v7x core idle
        if steps % 2:
            steps += 1                   # even split across the two cores
        tb = min(tb, _round_up(pl.cdiv(B, steps), 8))
    return max(tb, 8)


# --------------------------------------------------------------------------
# One-shot prep kernel: batch-invariant (-2/T) and the MXU-dtype copy of W.
# Row-tiled over cout so only a (tr, cout) slab of W @ W^T is live in VMEM.
# --------------------------------------------------------------------------
def _prep_kernel(w_blk_ref, w_full_ref, q_blk_ref, q_full_ref,
                 scale_ref, w_lo_ref):
    w_blk = w_blk_ref[...]                                    # (tr, cin) f32
    # Row block of W @ W^T: contract cin of both (no explicit transpose).
    wwT = lax.dot_general(
        w_blk, w_full_ref[...], (((1,), (1,)), ((), ())),
        preferred_element_type=jnp.float32)                   # (tr, cout)
    q_abs = jnp.abs(q_full_ref[...])                          # (1, cout)
    # S_i = sum_j |q_j| * |wwT_{i,j}| emitted directly as a (1, tr) lane row.
    s = lax.dot_general(
        q_abs, jnp.abs(wwT), (((1,), (1,)), ((), ())),
        preferred_element_type=jnp.float32)                   # (1, tr)
    t = s / (jnp.abs(q_blk_ref[...]) + EPSILON)               # T for this block
    scale_ref[...] = -2.0 / t
    w_lo_ref[...] = w_blk.astype(w_lo_ref.dtype)


def precompute_scale_and_weights(weights, q, *, mxu_dtype=jnp.bfloat16):
    """Returns ((1, cout) f32 scale = -2/T, (cout, cin) W in MXU dtype).

    Batch-invariant: callers that reuse W/q across many forward calls should
    cache this result and call `sdp_lipschitz_linear_apply` directly.
    """
    cout, cin = weights.shape
    w_f32 = weights.astype(jnp.float32)
    q2d = q.reshape(1, cout).astype(jnp.float32)

    # Row-block size: multiple of 128 (lane rule for the (1, tr) blocks) that
    # divides cout, or the full cout when small / not 128-aligned.
    tr = cout
    if cout > 512 and cout % 128 == 0:
        for cand in (512, 384, 256, 128):
            if cout % cand == 0:
                tr = cand
                break
    grid_r = pl.cdiv(cout, tr)

    cap = _vmem_cap_bytes()
    w_lo_itemsize = jnp.dtype(mxu_dtype).itemsize
    est = (2 * cout * cin * 4            # resident f32 W (2 pipeline buffers)
           + 2 * tr * cin * 4            # W row-block buffers
           + tr * cout * 4               # wwT slab
           + 4 * (cout + tr) * 4         # q rows
           + 2 * tr * 4                  # scale out
           + 2 * tr * cin * w_lo_itemsize)  # w_lo out buffers
    vmem_limit = int(min(cap, max(2 * est, 16 << 20)))

    scale, w_lo = pl.pallas_call(
        _prep_kernel,
        out_shape=(jax.ShapeDtypeStruct((1, cout), jnp.float32),
                   jax.ShapeDtypeStruct((cout, cin), mxu_dtype)),
        grid=(grid_r,),
        in_specs=[
            pl.BlockSpec((tr, cin), lambda i: (i, 0)),     # W row block
            pl.BlockSpec((cout, cin), lambda i: (0, 0)),   # W full (resident)
            pl.BlockSpec((1, tr), lambda i: (0, i)),       # q block
            pl.BlockSpec((1, cout), lambda i: (0, 0)),     # q full (resident)
        ],
        out_specs=[
            pl.BlockSpec((1, tr), lambda i: (0, i)),
            pl.BlockSpec((tr, cin), lambda i: (i, 0)),
        ],
        compiler_params=pltpu.CompilerParams(
            dimension_semantics=("arbitrary",),
            vmem_limit_bytes=vmem_limit),
    )(w_f32, w_f32, q2d, q2d)
    return scale, w_lo


# --------------------------------------------------------------------------
# Main batch-tiled kernel
# --------------------------------------------------------------------------
def _sdp_lipschitz_kernel(x_ref, w_ref, b_ref, scale_ref, out_ref):
    w = w_ref[...]                                            # (cout, cin)
    # res = relu(x @ W^T + b): trans-B via dot_general contracting cin.
    res = lax.dot_general(
        x_ref[...].astype(w.dtype), w, (((1,), (1,)), ((), ())),
        preferred_element_type=jnp.float32)                   # (TB, cout) f32
    res = jnp.maximum(res + b_ref[...], 0.0) * scale_ref[...]  # relu, (-2/T)*
    # res @ W back to (TB, cin); residual add in f32, cast on store.
    res_back = jnp.dot(res.astype(w.dtype), w,
                       preferred_element_type=jnp.float32)
    out_ref[...] = (x_ref[...].astype(jnp.float32)
                    + res_back).astype(out_ref.dtype)


def _run_main(x, w_lo, b2d, scale, tb, vmem_limit, buffer_count, alias_input):
    B, cin = x.shape
    cout = w_lo.shape[0]
    inv_kw = ({} if buffer_count is None
              else {"pipeline_mode": pl.Buffered(buffer_count)})
    in_specs = [
        pl.BlockSpec((tb, cin), lambda i: (i, 0)),             # x: batch tiled
        pl.BlockSpec((cout, cin), lambda i: (0, 0), **inv_kw),  # W: resident
        pl.BlockSpec((1, cout), lambda i: (0, 0), **inv_kw),    # bias
        pl.BlockSpec((1, cout), lambda i: (0, 0), **inv_kw),    # -2/T
    ]
    extra = {"input_output_aliases": {0: 0}} if alias_input else {}
    return pl.pallas_call(
        _sdp_lipschitz_kernel,
        out_shape=jax.ShapeDtypeStruct((B, cin), x.dtype),
        grid=(pl.cdiv(B, tb),),
        in_specs=in_specs,
        out_specs=pl.BlockSpec((tb, cin), lambda i: (i, 0)),
        compiler_params=pltpu.CompilerParams(
            dimension_semantics=("parallel",),
            vmem_limit_bytes=vmem_limit),
        **extra,
    )(x, w_lo, b2d, scale)


def sdp_lipschitz_linear_apply(x, w_lo, bias, scale, *, block_b=None,
                               single_buffer_invariants=True,
                               alias_input=False):
    """x: (B, cin) (f32 or bf16), w_lo: (cout, cin) MXU dtype,
    bias: (cout,), scale: -2/T of shape (cout,) or (1, cout)."""
    B, cin = x.shape
    cout = w_lo.shape[0]
    b2d = bias.reshape(1, cout).astype(jnp.float32)
    scale2d = scale.reshape(1, cout).astype(jnp.float32)

    cap = _vmem_cap_bytes()
    x_bytes = jnp.dtype(x.dtype).itemsize
    w_bytes = jnp.dtype(w_lo.dtype).itemsize
    # Per-batch-row VMEM cost, including kernel-internal temporaries.
    per_row = (2 * cin * x_bytes        # x tile (double-buffered)
               + 2 * cin * x_bytes      # out tile (double-buffered)
               + cin * w_bytes          # x cast to MXU dtype
               + cout * 4               # res (f32)
               + cout * w_bytes         # res cast to MXU dtype
               + cin * 4)               # res_back (f32)
    slack = 2 << 20                      # compiler-internal scratch headroom
    fixed = 2 * cout * cin * w_bytes + 8 * cout * 4 + slack
    tb = _choose_batch_tile(B, per_row, int(cap * 0.8) - fixed, block_b)
    est = fixed + tb * per_row
    vmem_limit = int(min(cap, max(int(1.25 * est), 16 << 20)))

    if single_buffer_invariants:
        try:
            return _run_main(x, w_lo, b2d, scale2d, tb, vmem_limit,
                             buffer_count=1, alias_input=alias_input)
        except Exception:
            pass  # pipeline_mode unsupported on this Pallas -> default buffering
    return _run_main(x, w_lo, b2d, scale2d, tb, vmem_limit,
                     buffer_count=None, alias_input=alias_input)


def sdp_lipschitz_linear_forward(x, weights, bias, q, *, block_b=None,
                                 mxu_dtype=jnp.bfloat16,
                                 single_buffer_invariants=True,
                                 alias_input=False):
    """Full forward: x: (B, cin), weights: (cout, cin), bias/q: (cout,)."""
    scale, w_lo = precompute_scale_and_weights(weights, q, mxu_dtype=mxu_dtype)
    return sdp_lipschitz_linear_apply(
        x, w_lo, bias, scale, block_b=block_b,
        single_buffer_invariants=single_buffer_invariants,
        alias_input=alias_input)


# --------------------------------------------------------------------------
# Pure-JAX reference and self-test
# --------------------------------------------------------------------------
def _reference_forward(x, weights, bias, q):
    res = x @ weights.T + bias[None, :]
    res = jnp.maximum(res, 0.0)
    q_abs = jnp.abs(q)
    q_row = q_abs[None, :]
    q_inv = (1.0 / (q_abs + EPSILON))[:, None]
    T = jnp.abs(q_inv * (weights @ weights.T) * q_row).sum(1)
    neg2TInv = -2.0 / T
    res = neg2TInv[None, :] * res
    res = res @ weights
    return x + res


if __name__ == "__main__":
    # Small, lane-friendly shapes; B=64 gives a 2-step grid (pipelining +
    # megacore split on v7x) with the auto-chosen batch tile.
    B, cin, cout = 64, 128, 256

    key = jax.random.PRNGKey(0)
    k_x, k_w, k_b, k_q = jax.random.split(key, 4)

    # Deterministic init matching the module's __init__ distributions.
    xavier_std = (2.0 / (cin + cout)) ** 0.5
    weights = xavier_std * jax.random.normal(k_w, (cout, cin), dtype=jnp.float32)
    bound = 1.0 / (cin ** 0.5)
    bias = jax.random.uniform(k_b, (cout,), minval=-bound, maxval=bound,
                              dtype=jnp.float32)
    q = jax.random.uniform(k_q, (cout,), dtype=jnp.float32)
    x = jax.random.normal(k_x, (B, cin), dtype=jnp.float32)

    out = sdp_lipschitz_linear_forward(x, weights, bias, q)
    out = jax.block_until_ready(out)

    ref = _reference_forward(x, weights, bias, q)
    assert out.shape == (B, cin)
    assert out.dtype == x.dtype
    # bf16 MXU operands with f32 accumulation -> slightly looser tolerance.
    max_err = float(jnp.max(jnp.abs(out - ref)))
    assert jnp.allclose(out, ref, rtol=2e-2, atol=2e-2), (
        f"mismatch vs reference (max abs err {max_err})")

    print("KERNEL_OK")
</pallas_src>

<mosaic_0001>
module attributes {stable_mosaic.version = 11 : i64} {
  func.func @_prep_kernel(%arg0: i32, %arg1: memref<256x128xf32, #tpu.memory_space<vmem>>, %arg2: memref<256x128xf32, #tpu.memory_space<vmem>>, %arg3: memref<1x256xf32, #tpu.memory_space<vmem>>, %arg4: memref<1x256xf32, #tpu.memory_space<vmem>>, %arg5: memref<1x256xf32, #tpu.memory_space<vmem>>, %arg6: memref<256x128xbf16, #tpu.memory_space<vmem>>) attributes {dimension_semantics = [#tpu.dimension_semantics<arbitrary>], iteration_bounds = array<i64: 1>, scalar_prefetch = 0 : i64, scratch_operands = 0 : i64, tpu.core_type = #tpu.core_type<tc>, window_params = [{transform_indices = @transform_0, window_bounds = array<i64: 256, 128>}, {pipeline_mode = #tpu.pipeline_mode<synchronous>, transform_indices = @transform_1, window_bounds = array<i64: 256, 128>}, {transform_indices = @transform_2, window_bounds = array<i64: 1, 256>}, {pipeline_mode = #tpu.pipeline_mode<synchronous>, transform_indices = @transform_3, window_bounds = array<i64: 1, 256>}, {transform_indices = @transform_4, window_bounds = array<i64: 1, 256>}, {transform_indices = @transform_5, window_bounds = array<i64: 256, 128>}]} {
    %c0 = arith.constant 0 : index
    %c0_0 = arith.constant 0 : index
    %0 = vector.load %arg1[%c0, %c0_0] : memref<256x128xf32, #tpu.memory_space<vmem>>, vector<256x128xf32>
    %c0_1 = arith.constant 0 : index
    %c0_2 = arith.constant 0 : index
    %1 = vector.load %arg2[%c0_1, %c0_2] : memref<256x128xf32, #tpu.memory_space<vmem>>, vector<256x128xf32>
    %cst = arith.constant dense<0.000000e+00> : vector<256x256xf32>
    %2 = tpu.matmul %0, %1, %cst {dimension_numbers = #tpu.dot_dimension_numbers<[1], [1], [0], [0], [0, 0, 1, 0], [], []>} : vector<256x128xf32>, vector<256x128xf32>, vector<256x256xf32> -> vector<256x256xf32>
    %c0_3 = arith.constant 0 : index
    %c0_4 = arith.constant 0 : index
    %3 = vector.load %arg4[%c0_3, %c0_4] : memref<1x256xf32, #tpu.memory_space<vmem>>, vector<1x256xf32>
    %4 = math.absf %3 : vector<1x256xf32>
    %5 = math.absf %2 : vector<256x256xf32>
    %cst_5 = arith.constant dense<0.000000e+00> : vector<1x256xf32>
    %6 = tpu.matmul %4, %5, %cst_5 {dimension_numbers = #tpu.dot_dimension_numbers<[1], [1], [0], [0], [0, 0, 1, 0], [], []>} : vector<1x256xf32>, vector<256x256xf32>, vector<1x256xf32> -> vector<1x256xf32>
    %c0_6 = arith.constant 0 : index
    %c0_7 = arith.constant 0 : index
    %7 = vector.load %arg3[%c0_6, %c0_7] : memref<1x256xf32, #tpu.memory_space<vmem>>, vector<1x256xf32>
    %8 = math.absf %7 : vector<1x256xf32>
    %cst_8 = arith.constant 9.99999997E-7 : f32
    %9 = vector.broadcast %cst_8 : f32 to vector<1x256xf32>
    %10 = arith.addf %8, %9 : vector<1x256xf32>
    %11 = arith.divf %6, %10 : vector<1x256xf32>
    %cst_9 = arith.constant -2.000000e+00 : f32
    %12 = vector.broadcast %cst_9 : f32 to vector<1x256xf32>
    %13 = arith.divf %12, %11 : vector<1x256xf32>
    %c0_10 = arith.constant 0 : index
    %c0_11 = arith.constant 0 : index
    %14 = vector.load %arg5[%c0_10, %c0_11] : memref<1x256xf32, #tpu.memory_space<vmem>>, vector<1x256xf32>
    tpu.vector_store %arg5[%c0_10, %c0_11], %13 {strides = array<i32>} : memref<1x256xf32, #tpu.memory_space<vmem>>, vector<1x256xf32>,
    %15 = arith.truncf %0 : vector<256x128xf32> to vector<256x128xbf16>
    %c0_12 = arith.constant 0 : index
    %c0_13 = arith.constant 0 : index
    %16 = vector.load %arg6[%c0_12, %c0_13] : memref<256x128xbf16, #tpu.memory_space<vmem>>, vector<256x128xbf16>
    tpu.vector_store %arg6[%c0_12, %c0_13], %15 {strides = array<i32>} : memref<256x128xbf16, #tpu.memory_space<vmem>>, vector<256x128xbf16>,
    return
  }
  func.func @transform_0(%arg0: i32) -> (i32, i32) {
    %c0_i32 = arith.constant 0 : i32
    %c0_i32_0 = arith.constant 0 : i32
    return %arg0, %c0_i32 : i32, i32
  }
  func.func @transform_1(%arg0: i32) -> (i32, i32) {
    %c0_i32 = arith.constant 0 : i32
    %c0_i32_0 = arith.constant 0 : i32
    %c0_i32_1 = arith.constant 0 : i32
    return %c0_i32, %c0_i32_0 : i32, i32
  }
  func.func @transform_2(%arg0: i32) -> (i32, i32) {
    %c0_i32 = arith.constant 0 : i32
    %c0_i32_0 = arith.constant 0 : i32
    return %c0_i32, %arg0 : i32, i32
  }
  func.func @transform_3(%arg0: i32) -> (i32, i32) {
    %c0_i32 = arith.constant 0 : i32
    %c0_i32_0 = arith.constant 0 : i32
    %c0_i32_1 = arith.constant 0 : i32
    return %c0_i32, %c0_i32_0 : i32, i32
  }
  func.func @transform_4(%arg0: i32) -> (i32, i32) {
    %c0_i32 = arith.constant 0 : i32
    %c0_i32_0 = arith.constant 0 : i32
    return %c0_i32, %arg0 : i32, i32
  }
  func.func @transform_5(%arg0: i32) -> (i32, i32) {
    %c0_i32 = arith.constant 0 : i32
    %c0_i32_0 = arith.constant 0 : i32
    return %arg0, %c0_i32 : i32, i32
  }
}

</mosaic_0001>

<llo_original>
// kernel: tpu_custom_call.1
$region0: #{tpu_custom_call.1}
  #allocation0 [shape = 'u32[]', space=smem, size = 0x4, offset = 0x4, fixed_abs, tag = 'smem constant byte address 0x4 - core index']
  #allocation1 [shape = 'u32[144,128]{1,0:T(1,128)}', space=vmem, size = 0x12000, scoped, tag = 'internal scratch']
  %s0 = inlined_call_operand.hbm [shape: f32[256,128], index: 0, kind: input, shape index: {}]
  %s1 = inlined_call_operand.hbm [shape: f32[256,128], index: 1, kind: input, shape index: {}]
  %s2 = inlined_call_operand.vmem [shape: f32[1,256], index: 2, kind: input, shape index: {}]
  %s3 = inlined_call_operand.vmem [shape: f32[1,256], index: 3, kind: input, shape index: {}]
  %s4 = inlined_call_operand.hbm [shape: f32[1,256], index: 4, kind: output, shape index: {0}]
  %s5 = inlined_call_operand.hbm [shape: bf16[256,128], index: 5, kind: output, shape index: {1}]
  %6 = xla_tuple %s4, %s5
  %s7 = sld [smem:[#allocation0]]
  $region42: #{tpu_custom_call.1} parent=0
    _
  %s9 = ssub.s32 1, %s7
  %s10 = scalar_select 0, %s9, %s7
  $region1: #{tpu_custom_call.1} parent=0
    #allocation2 [shape = 'u8[131072]{0}', space=vmem, size = 0x20000, scoped, tag = 'input window, operand 0, single buffered']
    #allocation3 [shape = 's32[1]{0}', space=sflag, size = 0x4, scoped, tag = 'scoped memory for tpu_custom_call.1']
    #allocation4 [shape = 's32[1]{0}', space=sflag, size = 0x4, scoped, tag = 'scoped memory for tpu_custom_call.1']
    #allocation5 [shape = 'u8[131072]{0}', space=vmem, size = 0x20000, scoped, tag = 'input window, operand 1, single buffered']
    #allocation6 [shape = 's32[1]{0}', space=sflag, size = 0x4, scoped, tag = 'scoped memory for tpu_custom_call.1']
    #allocation7 [shape = 'u8[1024]{0}', space=vmem, size = 0x400, scoped, tag = 'output window, operand 0, single buffered']
    #allocation8 [shape = 'u8[65536]{0}', space=vmem, size = 0x10000, scoped, tag = 'output window, operand 1, single buffered']
    #allocation9 [shape = 's32[1]{0}', space=sflag, size = 0x4, scoped, tag = 'scoped memory for tpu_custom_call.1']
    %11 = vsyncpa [#allocation3], 0
    %12 = vsyncpa [#allocation6], 0
    %13 = vsyncpa [#allocation4], 0
    %14 = vsyncpa [#allocation9], 0
    // Predicated region
    $region2: #{tpu_custom_call.1} parent=1 // pred_check
      _
    $region3: #{tpu_custom_call.1} parent=1 // pred_check_branch
      %16 = sbr.rel (0) target = $region5
    $region4: #{tpu_custom_call.1} parent=1 // pred_region
      %s18 = ssub.s32 4096, 4096
      %19 = vsyncadd [#allocation3], %s18
      %s20 = sshll.u32 [#allocation2], 4
      %s21 = int_to_ptr.vmem [resolvable:$true] %s20
      %26 = dma.hbm_to_vmem [thread:$0]  %s0, 4096, %s21, [#allocation3], 128, 128, 8
    $region5: #{tpu_custom_call.1} parent=1 // pred_fallthru
      _
    // Predicated region
    $region6: #{tpu_custom_call.1} parent=1 // pred_check
      _
    $region7: #{tpu_custom_call.1} parent=1 // pred_check_branch
      %28 = sbr.rel (0) target = $region9
    $region8: #{tpu_custom_call.1} parent=1 // pred_region
      %s30 = ssub.s32 4096, 4096
      %31 = vsyncadd [#allocation6], %s30
      %s32 = sshll.u32 [#allocation5], 4
      %s33 = int_to_ptr.vmem [resolvable:$true] %s32
      %38 = dma.hbm_to_vmem [thread:$0]  %s1, 4096, %s33, [#allocation6], 128, 128, 8
    $region9: #{tpu_custom_call.1} parent=1 // pred_fallthru
      _
    // Predicated region
    $region10: #{tpu_custom_call.1} parent=1 // pred_check
      _
    $region11: #{tpu_custom_call.1} parent=1 // pred_check_branch
      %40 = sbr.rel (0) target = $region13
    $region12: #{tpu_custom_call.1} parent=1 // pred_region
      _
    $region13: #{tpu_custom_call.1} parent=1 // pred_fallthru
      _
    // Predicated region
    $region14: #{tpu_custom_call.1} parent=1 // pred_check
      _
    $region15: #{tpu_custom_call.1} parent=1 // pred_check_branch
      %42 = sbr.rel (0) target = $region17
    $region16: #{tpu_custom_call.1} parent=1 // pred_region
      _
    $region17: #{tpu_custom_call.1} parent=1 // pred_fallthru
      _
    // Predicated region
    $region18: #{tpu_custom_call.1} parent=1 // pred_check
      _
    $region19: #{tpu_custom_call.1} parent=1 // pred_check_branch
      %44 = sbr.rel (0) target = $region21
    $region20: #{tpu_custom_call.1} parent=1 // pred_region
      %45 = dma.done [#allocation3], 4096
    $region21: #{tpu_custom_call.1} parent=1 // pred_fallthru
      _
    // Predicated region
    $region22: #{tpu_custom_call.1} parent=1 // pred_check
      _
    $region23: #{tpu_custom_call.1} parent=1 // pred_check_branch
      %47 = sbr.rel (0) target = $region25
    $region24: #{tpu_custom_call.1} parent=1 // pred_region
      %48 = dma.done [#allocation6], 4096
    $region25: #{tpu_custom_call.1} parent=1 // pred_fallthru
      _
    %v49 = vld [vmem:[#allocation2] sm:$0xff]
    %v50 = vld [vmem:[#allocation2 + $0x8] sm:$0xff]
    %v51 = vld [vmem:[#allocation2 + $0x10] sm:$0xff]
    %v52 = vld [vmem:[#allocation2 + $0x18] sm:$0xff]
    %v53 = vld [vmem:[#allocation2 + $0x20] sm:$0xff]
    %v54 = vld [vmem:[#allocation2 + $0x28] sm:$0xff]
    %v55 = vld [vmem:[#allocation2 + $0x30] sm:$0xff]
    %v56 = vld [vmem:[#allocation2 + $0x38] sm:$0xff]
    %v57 = vld [vmem:[#allocation2 + $0x40] sm:$0xff]
    %v58 = vld [vmem:[#allocation2 + $0x48] sm:$0xff]
    %v59 = vld [vmem:[#allocation2 + $0x50] sm:$0xff]
    %v60 = vld [vmem:[#allocation2 + $0x58] sm:$0xff]
    %v61 = vld [vmem:[#allocation2 + $0x60] sm:$0xff]
    %v62 = vld [vmem:[#allocation2 + $0x68] sm:$0xff]
    %v63 = vld [vmem:[#allocation2 + $0x70] sm:$0xff]
    %v64 = vld [vmem:[#allocation2 + $0x78] sm:$0xff]
    %v65 = vld [vmem:[#allocation2 + $0x80] sm:$0xff]
    %v66 = vld [vmem:[#allocation2 + $0x88] sm:$0xff]
    %v67 = vld [vmem:[#allocation2 + $0x90] sm:$0xff]
    %v68 = vld [vmem:[#allocation2 + $0x98] sm:$0xff]
    %v69 = vld [vmem:[#allocation2 + $0xa0] sm:$0xff]
    %v70 = vld [vmem:[#allocation2 + $0xa8] sm:$0xff]
    %v71 = vld [vmem:[#allocation2 + $0xb0] sm:$0xff]
    %v72 = vld [vmem:[#allocation2 + $0xb8] sm:$0xff]
    %v73 = vld [vmem:[#allocation2 + $0xc0] sm:$0xff]
    %v74 = vld [vmem:[#allocation2 + $0xc8] sm:$0xff]
    %v75 = vld [vmem:[#allocation2 + $0xd0] sm:$0xff]
    %v76 = vld [vmem:[#allocation2 + $0xd8] sm:$0xff]
    %v77 = vld [vmem:[#allocation2 + $0xe0] sm:$0xff]
    %v78 = vld [vmem:[#allocation2 + $0xe8] sm:$0xff]
    %v79 = vld [vmem:[#allocation2 + $0xf0] sm:$0xff]
    %v80 = vld [vmem:[#allocation2 + $0xf8] sm:$0xff]
    %v81 = vld [vmem:[#allocation5] sm:$0xff]
    %v82 = vld [vmem:[#allocation5 + $0x8] sm:$0xff]
    %v83 = vld [vmem:[#allocation5 + $0x10] sm:$0xff]
    %v84 = vld [vmem:[#allocation5 + $0x18] sm:$0xff]
    %v85 = vld [vmem:[#allocation5 + $0x20] sm:$0xff]
    %v86 = vld [vmem:[#allocation5 + $0x28] sm:$0xff]
    %v87 = vld [vmem:[#allocation5 + $0x30] sm:$0xff]
    %v88 = vld [vmem:[#allocation5 + $0x38] sm:$0xff]
    %v89 = vld [vmem:[#allocation5 + $0x40] sm:$0xff]
    %v90 = vld [vmem:[#allocation5 + $0x48] sm:$0xff]
    %v91 = vld [vmem:[#allocation5 + $0x50] sm:$0xff]
    %v92 = vld [vmem:[#allocation5 + $0x58] sm:$0xff]
    %v93 = vld [vmem:[#allocation5 + $0x60] sm:$0xff]
    %v94 = vld [vmem:[#allocation5 + $0x68] sm:$0xff]
    %v95 = vld [vmem:[#allocation5 + $0x70] sm:$0xff]
    %v96 = vld [vmem:[#allocation5 + $0x78] sm:$0xff]
    %v97 = vld [vmem:[#allocation5 + $0x80] sm:$0xff]
    %v98 = vld [vmem:[#allocation5 + $0x88] sm:$0xff]
    %v99 = vld [vmem:[#allocation5 + $0x90] sm:$0xff]
    %v100 = vld [vmem:[#allocation5 + $0x98] sm:$0xff]
    %v101 = vld [vmem:[#allocation5 + $0xa0] sm:$0xff]
    %v102 = vld [vmem:[#allocation5 + $0xa8] sm:$0xff]
    %v103 = vld [vmem:[#allocation5 + $0xb0] sm:$0xff]
    %v104 = vld [vmem:[#allocation5 + $0xb8] sm:$0xff]
    %v105 = vld [vmem:[#allocation5 + $0xc0] sm:$0xff]
    %v106 = vld [vmem:[#allocation5 + $0xc8] sm:$0xff]
    %v107 = vld [vmem:[#allocation5 + $0xd0] sm:$0xff]
    %v108 = vld [vmem:[#allocation5 + $0xd8] sm:$0xff]
    %v109 = vld [vmem:[#allocation5 + $0xe0] sm:$0xff]
    %v110 = vld [vmem:[#allocation5 + $0xe8] sm:$0xff]
    %v111 = vld [vmem:[#allocation5 + $0xf0] sm:$0xff]
    %v112 = vld [vmem:[#allocation5 + $0xf8] sm:$0xff]
    %113 = vmatprep.subr.mxu0 0.0
    %114 = vmatpush1.xpose.msra.mxu0 %v81
    %115 = vmatprep.subr.mxu0 0.0
    %116 = vmatpush1.xpose.msra.mxu0 %v82
    %117 = vmatprep.subr.mxu0 0.0
    %118 = vmatpush1.xpose.msra.mxu0 %v83
    %119 = vmatprep.subr.mxu0 0.0
    %120 = vmatpush1.xpose.msra.mxu0 %v84
    %121 = vmatprep.subr.mxu0 0.0
    %122 = vmatpush1.xpose.msra.mxu0 %v85
    %123 = vmatprep.subr.mxu0 0.0
    %124 = vmatpush1.xpose.msra.mxu0 %v86
    %125 = vmatprep.subr.mxu0 0.0
    %126 = vmatpush1.xpose.msra.mxu0 %v87
    %127 = vmatprep.subr.mxu0 0.0
    %128 = vmatpush1.xpose.msra.mxu0 %v88
    %129 = vmatprep.subr.mxu0 0.0
    %130 = vmatpush1.xpose.msra.mxu0 %v89
    %131 = vmatprep.subr.mxu0 0.0
    %132 = vmatpush1.xpose.msra.mxu0 %v90
    %133 = vmatprep.subr.mxu0 0.0
    %134 = vmatpush1.xpose.msra.mxu0 %v91
    %135 = vmatprep.subr.mxu0 0.0
    %136 = vmatpush1.xpose.msra.mxu0 %v92
    %137 = vmatprep.subr.mxu0 0.0
    %138 = vmatpush1.xpose.msra.mxu0 %v93
    %139 = vmatprep.subr.mxu0 0.0
    %140 = vmatpush1.xpose.msra.mxu0 %v94
    %141 = vmatprep.subr.mxu0 0.0
    %142 = vmatpush1.xpose.msra.mxu0 %v95
    %143 = vmatprep.subr.mxu0 0.0
    %144 = vmatpush1.xpose.msra.mxu0 %v96
    %145 = vmatprep.subr.mxu0 0.0
    %146 = vmatpush1.xpose.msra.mxu0 %v97
    %147 = vmatprep.subr.mxu0 0.0
    %148 = vmatpush1.xpose.msra.mxu0 %v98
    %149 = vmatprep.subr.mxu0 0.0
    %150 = vmatpush1.xpose.msra.mxu0 %v99
    %151 = vmatprep.subr.mxu0 0.0
    %152 = vmatpush1.xpose.msra.mxu0 %v100
    %153 = vmatprep.subr.mxu0 0.0
    %154 = vmatpush1.xpose.msra.mxu0 %v101
    %155 = vmatprep.subr.mxu0 0.0
    %156 = vmatpush1.xpose.msra.mxu0 %v102
    %157 = vmatprep.subr.mxu0 0.0
    %158 = vmatpush1.xpose.msra.mxu0 %v103
    %159 = vmatprep.subr.mxu0 0.0
    %160 = vmatpush1.xpose.msra.mxu0 %v104
    %161 = vmatprep.subr.mxu0 0.0
    %162 = vmatpush1.xpose.msra.mxu0 %v105
    %163 = vmatprep.subr.mxu0 0.0
    %164 = vmatpush1.xpose.msra.mxu0 %v106
    %165 = vmatprep.subr.mxu0 0.0
    %166 = vmatpush1.xpose.msra.mxu0 %v107
    %167 = vmatprep.subr.mxu0 0.0
    %168 = vmatpush1.xpose.msra.mxu0 %v108
    %169 = vmatprep.subr.mxu0 0.0
    %170 = vmatpush1.xpose.msra.mxu0 %v109
    %171 = vmatprep.subr.mxu0 0.0
    %172 = vmatpush1.xpose.msra.mxu0 %v110
    %173 = vmatprep.subr.mxu0 0.0
    %174 = vmatpush1.xpose.msra.mxu0 %v111
    %175 = vmatprep.subr.mxu0 0.0
    %176 = vmatpush1.xpose.msra.mxu0 %v112
    %177 = vmatprep.mubr.f32.mxu0 0.0
    %178 = vmatmul.mubr.f32.gmra.mrb[0].mxu0 %v49
    %v179 = vpop.f32.mrb[0].mxu0
    %v180 = vadd.f32 0.0, %v179
    %v181 = vpop.f32.mrb[0].mxu0
    %v182 = vadd.f32 0.0, %v181
    %183 = vmatprep.mubr.f32.mxu0 0.0
    %184 = vmatmul.mubr.f32.gmra.mrb[0].mxu0 %v50
    %v185 = vpop.f32.mrb[0].mxu0
    %v186 = vadd.f32 0.0, %v185
    %v187 = vpop.f32.mrb[0].mxu0
    %v188 = vadd.f32 0.0, %v187
    %189 = vmatprep.mubr.f32.mxu0 0.0
    %190 = vmatmul.mubr.f32.gmra.mrb[0].mxu0 %v51
    %v191 = vpop.f32.mrb[0].mxu0
    %v192 = vadd.f32 0.0, %v191
    %v193 = vpop.f32.mrb[0].mxu0
    %v194 = vadd.f32 0.0, %v193
    %195 = vmatprep.mubr.f32.mxu0 0.0
    %196 = vmatmul.mubr.f32.gmra.mrb[0].mxu0 %v52
    %v197 = vpop.f32.mrb[0].mxu0
    %v198 = vadd.f32 0.0, %v197
    %v199 = vpop.f32.mrb[0].mxu0
    %v200 = vadd.f32 0.0, %v199
    %201 = vmatprep.mubr.f32.mxu0 0.0
    %202 = vmatmul.mubr.f32.gmra.mrb[0].mxu0 %v53
    %v203 = vpop.f32.mrb[0].mxu0
    %v204 = vadd.f32 0.0, %v203
    %v205 = vpop.f32.mrb[0].mxu0
    %v206 = vadd.f32 0.0, %v205
    %207 = vmatprep.mubr.f32.mxu0 0.0
    %208 = vmatmul.mubr.f32.gmra.mrb[0].mxu0 %v54
    %v209 = vpop.f32.mrb[0].mxu0
    %v210 = vadd.f32 0.0, %v209
    %v211 = vpop.f32.mrb[0].mxu0
    %v212 = vadd.f32 0.0, %v211
    %213 = vmatprep.mubr.f32.mxu0 0.0
    %214 = vmatmul.mubr.f32.gmra.mrb[0].mxu0 %v55
    %v215 = vpop.f32.mrb[0].mxu0
    %v216 = vadd.f32 0.0, %v215
    %v217 = vpop.f32.mrb[0].mxu0
    %v218 = vadd.f32 0.0, %v217
    %219 = vmatprep.mubr.f32.mxu0 0.0
    %220 = vmatmul.mubr.f32.gmra.mrb[0].mxu0 %v56
    %v221 = vpop.f32.mrb[0].mxu0
    %v222 = vadd.f32 0.0, %v221
    %v223 = vpop.f32.mrb[0].mxu0
    %v224 = vadd.f32 0.0, %v223
    %225 = vmatprep.mubr.f32.mxu0 0.0
    %226 = vmatmul.mubr.f32.gmra.mrb[0].mxu0 %v57
    %v227 = vpop.f32.mrb[0].mxu0
    %v228 = vadd.f32 0.0, %v227
    %v229 = vpop.f32.mrb[0].mxu0
    %v230 = vadd.f32 0.0, %v229
    %231 = vmatprep.mubr.f32.mxu0 0.0
    %232 = vmatmul.mubr.f32.gmra.mrb[0].mxu0 %v58
    %v233 = vpop.f32.mrb[0].mxu0
    %v234 = vadd.f32 0.0, %v233
    %v235 = vpop.f32.mrb[0].mxu0
    %v236 = vadd.f32 0.0, %v235
    %237 = vmatprep.mubr.f32.mxu0 0.0
    %238 = vmatmul.mubr.f32.gmra.mrb[0].mxu0 %v59
    %v239 = vpop.f32.mrb[0].mxu0
    %v240 = vadd.f32 0.0, %v239
    %v241 = vpop.f32.mrb[0].mxu0
    %v242 = vadd.f32 0.0, %v241
    %243 = vmatprep.mubr.f32.mxu0 0.0
    %244 = vmatmul.mubr.f32.gmra.mrb[0].mxu0 %v60
    %v245 = vpop.f32.mrb[0].mxu0
    %v246 = vadd.f32 0.0, %v245
    %v247 = vpop.f32.mrb[0].mxu0
    %v248 = vadd.f32 0.0, %v247
    %249 = vmatprep.mubr.f32.mxu0 0.0
    %250 = vmatmul.mubr.f32.gmra.mrb[0].mxu0 %v61
    %v251 = vpop.f32.mrb[0].mxu0
    %v252 = vadd.f32 0.0, %v251
    %v253 = vpop.f32.mrb[0].mxu0
    %v254 = vadd.f32 0.0, %v253
    %255 = vmatprep.mubr.f32.mxu0 0.0
    %256 = vmatmul.mubr.f32.gmra.mrb[0].mxu0 %v62
    %v257 = vpop.f32.mrb[0].mxu0
    %v258 = vadd.f32 0.0, %v257
    %v259 = vpop.f32.mrb[0].mxu0
    %v260 = vadd.f32 0.0, %v259
    %261 = vmatprep.mubr.f32.mxu0 0.0
    %262 = vmatmul.mubr.f32.gmra.mrb[0].mxu0 %v63
    %v263 = vpop.f32.mrb[0].mxu0
    %v264 = vadd.f32 0.0, %v263
    %v265 = vpop.f32.mrb[0].mxu0
    %v266 = vadd.f32 0.0, %v265
    %267 = vmatprep.mubr.f32.mxu0 0.0
    %268 = vmatmul.mubr.f32.gmra.mrb[0].mxu0 %v64
    %v269 = vpop.f32.mrb[0].mxu0
    %v270 = vadd.f32 0.0, %v269
    %v271 = vpop.f32.mrb[0].mxu0
    %v272 = vadd.f32 0.0, %v271
    %273 = vmatprep.mubr.f32.mxu0 0.0
    %274 = vmatmul.mubr.f32.gmra.mrb[0].mxu0 %v65
    %v275 = vpop.f32.mrb[0].mxu0
    %v276 = vadd.f32 0.0, %v275
    %v277 = vpop.f32.mrb[0].mxu0
    %v278 = vadd.f32 0.0, %v277
    %279 = vmatprep.mubr.f32.mxu0 0.0
    %280 = vmatmul.mubr.f32.gmra.mrb[0].mxu0 %v66
    %v281 = vpop.f32.mrb[0].mxu0
    %v282 = vadd.f32 0.0, %v281
    %v283 = vpop.f32.mrb[0].mxu0
    %v284 = vadd.f32 0.0, %v283
    %285 = vmatprep.mubr.f32.mxu0 0.0
    %286 = vmatmul.mubr.f32.gmra.mrb[0].mxu0 %v67
    %v287 = vpop.f32.mrb[0].mxu0
    %v288 = vadd.f32 0.0, %v287
    %v289 = vpop.f32.mrb[0].mxu0
    %v290 = vadd.f32 0.0, %v289
    %291 = vmatprep.mubr.f32.mxu0 0.0
    %292 = vmatmul.mubr.f32.gmra.mrb[0].mxu0 %v68
    %v293 = vpop.f32.mrb[0].mxu0
    %v294 = vadd.f32 0.0, %v293
    %v295 = vpop.f32.mrb[0].mxu0
    %v296 = vadd.f32 0.0, %v295
    %297 = vmatprep.mubr.f32.mxu0 0.0
    %298 = vmatmul.mubr.f32.gmra.mrb[0].mxu0 %v69
    %v299 = vpop.f32.mrb[0].mxu0
    %v300 = vadd.f32 0.0, %v299
    %v301 = vpop.f32.mrb[0].mxu0
    %v302 = vadd.f32 0.0, %v301
    %303 = vmatprep.mubr.f32.mxu0 0.0
    %304 = vmatmul.mubr.f32.gmra.mrb[0].mxu0 %v70
    %v305 = vpop.f32.mrb[0].mxu0
    %v306 = vadd.f32 0.0, %v305
    %v307 = vpop.f32.mrb[0].mxu0
    %v308 = vadd.f32 0.0, %v307
    %309 = vmatprep.mubr.f32.mxu0 0.0
    %310 = vmatmul.mubr.f32.gmra.mrb[0].mxu0 %v71
    %v311 = vpop.f32.mrb[0].mxu0
    %v312 = vadd.f32 0.0, %v311
    %v313 = vpop.f32.mrb[0].mxu0
    %v314 = vadd.f32 0.0, %v313
    %315 = vmatprep.mubr.f32.mxu0 0.0
    %316 = vmatmul.mubr.f32.gmra.mrb[0].mxu0 %v72
    %v317 = vpop.f32.mrb[0].mxu0
    %v318 = vadd.f32 0.0, %v317
    %v319 = vpop.f32.mrb[0].mxu0
    %v320 = vadd.f32 0.0, %v319
    %321 = vmatprep.mubr.f32.mxu0 0.0
    %322 = vmatmul.mubr.f32.gmra.mrb[0].mxu0 %v73
    %v323 = vpop.f32.mrb[0].mxu0
    %v324 = vadd.f32 0.0, %v323
    %v325 = vpop.f32.mrb[0].mxu0
    %v326 = vadd.f32 0.0, %v325
    %327 = vmatprep.mubr.f32.mxu0 0.0
    %328 = vmatmul.mubr.f32.gmra.mrb[0].mxu0 %v74
    %v329 = vpop.f32.mrb[0].mxu0
    %v330 = vadd.f32 0.0, %v329
    %v331 = vpop.f32.mrb[0].mxu0
    %v332 = vadd.f32 0.0, %v331
    %333 = vmatprep.mubr.f32.mxu0 0.0
    %334 = vmatmul.mubr.f32.gmra.mrb[0].mxu0 %v75
    %v335 = vpop.f32.mrb[0].mxu0
    %v336 = vadd.f32 0.0, %v335
    %v337 = vpop.f32.mrb[0].mxu0
    %v338 = vadd.f32 0.0, %v337
    %339 = vmatprep.mubr.f32.mxu0 0.0
    %340 = vmatmul.mubr.f32.gmra.mrb[0].mxu0 %v76
    %v341 = vpop.f32.mrb[0].mxu0
    %v342 = vadd.f32 0.0, %v341
    %v343 = vpop.f32.mrb[0].mxu0
    %v344 = vadd.f32 0.0, %v343
    %345 = vmatprep.mubr.f32.mxu0 0.0
    %346 = vmatmul.mubr.f32.gmra.mrb[0].mxu0 %v77
    %v347 = vpop.f32.mrb[0].mxu0
    %v348 = vadd.f32 0.0, %v347
    %v349 = vpop.f32.mrb[0].mxu0
    %v350 = vadd.f32 0.0, %v349
    %351 = vmatprep.mubr.f32.mxu0 0.0
    %352 = vmatmul.mubr.f32.gmra.mrb[0].mxu0 %v78
    %v353 = vpop.f32.mrb[0].mxu0
    %v354 = vadd.f32 0.0, %v353
    %v355 = vpop.f32.mrb[0].mxu0
    %v356 = vadd.f32 0.0, %v355
    %357 = vmatprep.mubr.f32.mxu0 0.0
    %358 = vmatmul.mubr.f32.gmra.mrb[0].mxu0 %v79
    %v359 = vpop.f32.mrb[0].mxu0
    %v360 = vadd.f32 0.0, %v359
    %v361 = vpop.f32.mrb[0].mxu0
    %v362 = vadd.f32 0.0, %v361
    %363 = vmatprep.mubr.f32.mxu0 0.0
    %364 = vmatmul.mubr.f32.gmra.mrb[0].mxu0 %v80
    %v365 = vpop.f32.mrb[0].mxu0
    %v366 = vadd.f32 0.0, %v365
    %v367 = vpop.f32.mrb[0].mxu0
    %v368 = vadd.f32 0.0, %v367
    %369 = vdwg.mxu0
    %v370 = vld [vmem:[%s3] sm:$0x3]
    %v371 = vand.u32 2147483647, %v370
    %v372 = vand.u32 2147483647, %v180
    %v373 = vand.u32 2147483647, %v182
    %v374 = vand.u32 2147483647, %v186
    %v375 = vand.u32 2147483647, %v188
    %v376 = vand.u32 2147483647, %v192
    %v377 = vand.u32 2147483647, %v194
    %v378 = vand.u32 2147483647, %v198
    %v379 = vand.u32 2147483647, %v200
    %v380 = vand.u32 2147483647, %v204
    %v381 = vand.u32 2147483647, %v206
    %v382 = vand.u32 2147483647, %v210
    %v383 = vand.u32 2147483647, %v212
    %v384 = vand.u32 2147483647, %v216
    %v385 = vand.u32 2147483647, %v218
    %v386 = vand.u32 2147483647, %v222
    %v387 = vand.u32 2147483647, %v224
    %v388 = vand.u32 2147483647, %v228
    %v389 = vand.u32 2147483647, %v230
    %v390 = vand.u32 2147483647, %v234
    %v391 = vand.u32 2147483647, %v236
    %v392 = vand.u32 2147483647, %v240
    %v393 = vand.u32 2147483647, %v242
    %v394 = vand.u32 2147483647, %v246
    %v395 = vand.u32 2147483647, %v248
    %v396 = vand.u32 2147483647, %v252
    %v397 = vand.u32 2147483647, %v254
    %v398 = vand.u32 2147483647, %v258
    %v399 = vand.u32 2147483647, %v260
    %v400 = vand.u32 2147483647, %v264
    %v401 = vand.u32 2147483647, %v266
    %v402 = vand.u32 2147483647, %v270
    %v403 = vand.u32 2147483647, %v272
    %v404 = vand.u32 2147483647, %v276
    %v405 = vand.u32 2147483647, %v278
    %v406 = vand.u32 2147483647, %v282
    %v407 = vand.u32 2147483647, %v284
    %v408 = vand.u32 2147483647, %v288
    %v409 = vand.u32 2147483647, %v290
    %v410 = vand.u32 2147483647, %v294
    %v411 = vand.u32 2147483647, %v296
    %v412 = vand.u32 2147483647, %v300
    %v413 = vand.u32 2147483647, %v302
    %v414 = vand.u32 2147483647, %v306
    %v415 = vand.u32 2147483647, %v308
    %v416 = vand.u32 2147483647, %v312
    %v417 = vand.u32 2147483647, %v314
    %v418 = vand.u32 2147483647, %v318
    %v419 = vand.u32 2147483647, %v320
    %v420 = vand.u32 2147483647, %v324
    %v421 = vand.u32 2147483647, %v326
    %v422 = vand.u32 2147483647, %v330
    %v423 = vand.u32 2147483647, %v332
    %v424 = vand.u32 2147483647, %v336
    %v425 = vand.u32 2147483647, %v338
    %v426 = vand.u32 2147483647, %v342
    %v427 = vand.u32 2147483647, %v344
    %v428 = vand.u32 2147483647, %v348
    %v429 = vand.u32 2147483647, %v350
    %v430 = vand.u32 2147483647, %v354
    %v431 = vand.u32 2147483647, %v356
    %v432 = vand.u32 2147483647, %v360
    %v433 = vand.u32 2147483647, %v362
    %v434 = vand.u32 2147483647, %v366
    %v435 = vand.u32 2147483647, %v368
    %v437 = vlaneseq
    %v438 = vshrl.u32 %v437, 7
    %v439 = vsub.s32 0, %v438
    %v440 = vrot.slane %v371, %v439
    %v441 = vlaneseq
    %v442 = vshrl.u32 %v441, 7
    %v443 = vsub.s32 1, %v442
    %v444 = vrot.slane %v371, %v443
    %447 = vmatprep.subr.mxu0 %v373
    %448 = vmatpush1.xpose.msra.mxu0 %v372
    %449 = vmatprep.subr.mxu0 %v375
    %450 = vmatpush1.xpose.msra.mxu0 %v374
    %451 = vmatprep.subr.mxu0 %v377
    %452 = vmatpush1.xpose.msra.mxu0 %v376
    %453 = vmatprep.subr.mxu0 %v379
    %454 = vmatpush1.xpose.msra.mxu0 %v378
    %455 = vmatprep.subr.mxu0 %v381
    %456 = vmatpush1.xpose.msra.mxu0 %v380
    %457 = vmatprep.subr.mxu0 %v383
    %458 = vmatpush1.xpose.msra.mxu0 %v382
    %459 = vmatprep.subr.mxu0 %v385
    %460 = vmatpush1.xpose.msra.mxu0 %v384
    %461 = vmatprep.subr.mxu0 %v387
    %462 = vmatpush1.xpose.msra.mxu0 %v386
    %463 = vmatprep.subr.mxu0 %v389
    %464 = vmatpush1.xpose.msra.mxu0 %v388
    %465 = vmatprep.subr.mxu0 %v391
    %466 = vmatpush1.xpose.msra.mxu0 %v390
    %467 = vmatprep.subr.mxu0 %v393
    %468 = vmatpush1.xpose.msra.mxu0 %v392
    %469 = vmatprep.subr.mxu0 %v395
    %470 = vmatpush1.xpose.msra.mxu0 %v394
    %471 = vmatprep.subr.mxu0 %v397
    %472 = vmatpush1.xpose.msra.mxu0 %v396
    %473 = vmatprep.subr.mxu0 %v399
    %474 = vmatpush1.xpose.msra.mxu0 %v398
    %475 = vmatprep.subr.mxu0 %v401
    %476 = vmatpush1.xpose.msra.mxu0 %v400
    %477 = vmatprep.subr.mxu0 %v403
    %478 = vmatpush1.xpose.msra.mxu0 %v402
    %479 = vmatprep.subr.mxu0 %v405
    %480 = vmatpush1.xpose.msra.mxu0 %v404
    %481 = vmatprep.subr.mxu0 %v407
    %482 = vmatpush1.xpose.msra.mxu0 %v406
    %483 = vmatprep.subr.mxu0 %v409
    %484 = vmatpush1.xpose.msra.mxu0 %v408
    %485 = vmatprep.subr.mxu0 %v411
    %486 = vmatpush1.xpose.msra.mxu0 %v410
    %487 = vmatprep.subr.mxu0 %v413
    %488 = vmatpush1.xpose.msra.mxu0 %v412
    %489 = vmatprep.subr.mxu0 %v415
    %490 = vmatpush1.xpose.msra.mxu0 %v414
    %491 = vmatprep.subr.mxu0 %v417
    %492 = vmatpush1.xpose.msra.mxu0 %v416
    %493 = vmatprep.subr.mxu0 %v419
    %494 = vmatpush1.xpose.msra.mxu0 %v418
    %495 = vmatprep.subr.mxu0 %v421
    %496 = vmatpush1.xpose.msra.mxu0 %v420
    %497 = vmatprep.subr.mxu0 %v423
    %498 = vmatpush1.xpose.msra.mxu0 %v422
    %499 = vmatprep.subr.mxu0 %v425
    %500 = vmatpush1.xpose.msra.mxu0 %v424
    %501 = vmatprep.subr.mxu0 %v427
    %502 = vmatpush1.xpose.msra.mxu0 %v426
    %503 = vmatprep.subr.mxu0 %v429
    %504 = vmatpush1.xpose.msra.mxu0 %v428
    %505 = vmatprep.subr.mxu0 %v431
    %506 = vmatpush1.xpose.msra.mxu0 %v430
    %507 = vmatprep.subr.mxu0 %v433
    %508 = vmatpush1.xpose.msra.mxu0 %v432
    %509 = vmatprep.subr.mxu0 %v435
    %510 = vmatpush1.xpose.msra.mxu0 %v434
    %511 = vmatprep.mubr.f32.mxu0 %v444
    %512 = vmatmul.mubr.f32.gmra.mrb[0].mxu0 %v440
    %v513 = vpop.f32.mrb[0].mxu0
    %v514 = vadd.f32 0.0, %v513
    %v515 = vpop.f32.mrb[0].mxu0
    %v516 = vadd.f32 0.0, %v515
    %517 = vdwg.mxu0
    %v518 = vld [vmem:[%s2] sm:$0x3]
    %v519 = vand.u32 2147483647, %v518
    %v520 = vadd.f32 %v519, 1e-06
    %v522 = vlaneseq
    %v523 = vshrl.u32 %v522, 7
    %v524 = vsub.s32 0, %v523
    %v525 = vrot.slane %v520, %v524
    %v526 = vlaneseq
    %v527 = vshrl.u32 %v526, 7
    %v528 = vsub.s32 1, %v527
    %v529 = vrot.slane %v520, %v528
    %v532 = vrcp.pop %v525
    %v533 = vmul.f32 %v514, %v532
    %v534 = vrcp.pop %v529
    %v535 = vmul.f32 %v516, %v534
    %v536 = vrcp.pop %v533
    %v537 = vmul.f32 -2.0, %v536
    %v538 = vrcp.pop %v535
    %v539 = vmul.f32 -2.0, %v538
    %v542 = vcombine.low %v537, %v539
    %v544 = vunpack.c.l.s4 1966171168
    %v545 = vunpack.c.0.s8 %v544
    %v546 = vlaneseq
    %v547 = vshrl.u32 %v546, 7
    %v548 = vsub.s32 %v545, %v547
    %v549 = vrot.slane %v542, %v548
    %v551 = vunpack.c.l.s4 1966171168
    %v552 = vunpack.c.0.s8 %v551
    %v553 = vlaneseq
    %v554 = vshrl.u32 %v553, 7
    %v555 = vsub.s32 %v552, %v554
    %v556 = vrot.slane %v549, %v555
    %v558 = vlaneseq
    %vm559 = vcmp.ge.s32.totalorder %v558, 0
    %vm560 = vcmp.lt.s32.totalorder %v558, 256
    %vm561 = vmand %vm559, %vm560
    %562 = vst.msk [vmem:[#allocation7] sm:$0x3] %vm561, %v556
    %v563 = vpack.c.bf16 %v50, %v49
    %v564 = vpack.c.bf16 %v52, %v51
    %v565 = vpack.c.bf16 %v54, %v53
    %v566 = vpack.c.bf16 %v56, %v55
    %v567 = vpack.c.bf16 %v58, %v57
    %v568 = vpack.c.bf16 %v60, %v59
    %v569 = vpack.c.bf16 %v62, %v61
    %v570 = vpack.c.bf16 %v64, %v63
    %v571 = vpack.c.bf16 %v66, %v65
    %v572 = vpack.c.bf16 %v68, %v67
    %v573 = vpack.c.bf16 %v70, %v69
    %v574 = vpack.c.bf16 %v72, %v71
    %v575 = vpack.c.bf16 %v74, %v73
    %v576 = vpack.c.bf16 %v76, %v75
    %v577 = vpack.c.bf16 %v78, %v77
    %v578 = vpack.c.bf16 %v80, %v79
    %v595 = vunpack.c.l.b16 %v563
    %v596 = vunpack.c.h.b16 %v563
    %v597 = vunpack.c.l.b16 %v564
    %v598 = vunpack.c.h.b16 %v564
    %v599 = vunpack.c.l.b16 %v565
    %v600 = vunpack.c.h.b16 %v565
    %v601 = vunpack.c.l.b16 %v566
    %v602 = vunpack.c.h.b16 %v566
    %v603 = vunpack.c.l.b16 %v567
    %v604 = vunpack.c.h.b16 %v567
    %v605 = vunpack.c.l.b16 %v568
    %v606 = vunpack.c.h.b16 %v568
    %v607 = vunpack.c.l.b16 %v569
    %v608 = vunpack.c.h.b16 %v569
    %v609 = vunpack.c.l.b16 %v570
    %v610 = vunpack.c.h.b16 %v570
    %v611 = vunpack.c.l.b16 %v571
    %v612 = vunpack.c.h.b16 %v571
    %v613 = vunpack.c.l.b16 %v572
    %v614 = vunpack.c.h.b16 %v572
    %v615 = vunpack.c.l.b16 %v573
    %v616 = vunpack.c.h.b16 %v573
    %v617 = vunpack.c.l.b16 %v574
    %v618 = vunpack.c.h.b16 %v574
    %v619 = vunpack.c.l.b16 %v575
    %v620 = vunpack.c.h.b16 %v575
    %v621 = vunpack.c.l.b16 %v576
    %v622 = vunpack.c.h.b16 %v576
    %v623 = vunpack.c.l.b16 %v577
    %v624 = vunpack.c.h.b16 %v577
    %v625 = vunpack.c.l.b16 %v578
    %v626 = vunpack.c.h.b16 %v578
    %v627 = vpack.c.b16 %v595, %v595
    %v628 = vpack.c.b16 %v596, %v596
    %v629 = vpack.c.b16 %v597, %v597
    %v630 = vpack.c.b16 %v598, %v598
    %v631 = vpack.c.b16 %v599, %v599
    %v632 = vpack.c.b16 %v600, %v600
    %v633 = vpack.c.b16 %v601, %v601
    %v634 = vpack.c.b16 %v602, %v602
    %v635 = vpack.c.b16 %v603, %v603
    %v636 = vpack.c.b16 %v604, %v604
    %v637 = vpack.c.b16 %v605, %v605
    %v638 = vpack.c.b16 %v606, %v606
    %v639 = vpack.c.b16 %v607, %v607
    %v640 = vpack.c.b16 %v608, %v608
    %v641 = vpack.c.b16 %v609, %v609
    %v642 = vpack.c.b16 %v610, %v610
    %v643 = vpack.c.b16 %v611, %v611
    %v644 = vpack.c.b16 %v612, %v612
    %v645 = vpack.c.b16 %v613, %v613
    %v646 = vpack.c.b16 %v614, %v614
    %v647 = vpack.c.b16 %v615, %v615
    %v648 = vpack.c.b16 %v616, %v616
    %v649 = vpack.c.b16 %v617, %v617
    %v650 = vpack.c.b16 %v618, %v618
    %v651 = vpack.c.b16 %v619, %v619
    %v652 = vpack.c.b16 %v620, %v620
    %v653 = vpack.c.b16 %v621, %v621
    %v654 = vpack.c.b16 %v622, %v622
    %v655 = vpack.c.b16 %v623, %v623
    %v656 = vpack.c.b16 %v624, %v624
    %v657 = vpack.c.b16 %v625, %v625
    %v658 = vpack.c.b16 %v626, %v626
    %691 = vst [vmem:[#allocation8] sm:$0xf] %v627
    %692 = vst [vmem:[#allocation8 + $0x4] sm:$0xf] %v628
    %693 = vst [vmem:[#allocation8 + $0x8] sm:$0xf] %v629
    %694 = vst [vmem:[#allocation8 + $0xc] sm:$0xf] %v630
    %695 = vst [vmem:[#allocation8 + $0x10] sm:$0xf] %v631
    %696 = vst [vmem:[#allocation8 + $0x14] sm:$0xf] %v632
    %697 = vst [vmem:[#allocation8 + $0x18] sm:$0xf] %v633
    %698 = vst [vmem:[#allocation8 + $0x1c] sm:$0xf] %v634
    %699 = vst [vmem:[#allocation8 + $0x20] sm:$0xf] %v635
    %700 = vst [vmem:[#allocation8 + $0x24] sm:$0xf] %v636
    %701 = vst [vmem:[#allocation8 + $0x28] sm:$0xf] %v637
    %702 = vst [vmem:[#allocation8 + $0x2c] sm:$0xf] %v638
    %703 = vst [vmem:[#allocation8 + $0x30] sm:$0xf] %v639
    %704 = vst [vmem:[#allocation8 + $0x34] sm:$0xf] %v640
    %705 = vst [vmem:[#allocation8 + $0x38] sm:$0xf] %v641
    %706 = vst [vmem:[#allocation8 + $0x3c] sm:$0xf] %v642
    %707 = vst [vmem:[#allocation8 + $0x40] sm:$0xf] %v643
    %708 = vst [vmem:[#allocation8 + $0x44] sm:$0xf] %v644
    %709 = vst [vmem:[#allocation8 + $0x48] sm:$0xf] %v645
    %710 = vst [vmem:[#allocation8 + $0x4c] sm:$0xf] %v646
    %711 = vst [vmem:[#allocation8 + $0x50] sm:$0xf] %v647
    %712 = vst [vmem:[#allocation8 + $0x54] sm:$0xf] %v648
    %713 = vst [vmem:[#allocation8 + $0x58] sm:$0xf] %v649
    %714 = vst [vmem:[#allocation8 + $0x5c] sm:$0xf] %v650
    %715 = vst [vmem:[#allocation8 + $0x60] sm:$0xf] %v651
    %716 = vst [vmem:[#allocation8 + $0x64] sm:$0xf] %v652
    %717 = vst [vmem:[#allocation8 + $0x68] sm:$0xf] %v653
    %718 = vst [vmem:[#allocation8 + $0x6c] sm:$0xf] %v654
    %719 = vst [vmem:[#allocation8 + $0x70] sm:$0xf] %v655
    %720 = vst [vmem:[#allocation8 + $0x74] sm:$0xf] %v656
    %721 = vst [vmem:[#allocation8 + $0x78] sm:$0xf] %v657
    %722 = vst [vmem:[#allocation8 + $0x7c] sm:$0xf] %v658
    // Predicated region
    $region26: #{tpu_custom_call.1} parent=1 // pred_check
      _
    $region27: #{tpu_custom_call.1} parent=1 // pred_check_branch
      %724 = sbr.rel (0) target = $region29
    $region28: #{tpu_custom_call.1} parent=1 // pred_region
      %s726 = ssub.s32 32, 32
      %727 = vsyncadd [#allocation4], %s726
      %s729 = sshll.u32 [#allocation7], 4
      %s730 = int_to_ptr.vmem [resolvable:$true] %s729
      %732 = dma.vmem_to_hbm [thread:$0]  %s730, 32, %s4, [#allocation4]
    $region29: #{tpu_custom_call.1} parent=1 // pred_fallthru
      _
    // Predicated region
    $region30: #{tpu_custom_call.1} parent=1 // pred_check
      _
    $region31: #{tpu_custom_call.1} parent=1 // pred_check_branch
      %734 = sbr.rel (0) target = $region33
    $region32: #{tpu_custom_call.1} parent=1 // pred_region
      %s736 = ssub.s32 2048, 2048
      %737 = vsyncadd [#allocation9], %s736
      %s738 = sshll.u32 [#allocation8], 4
      %s739 = int_to_ptr.vmem [resolvable:$true] %s738
      %744 = dma.vmem_to_hbm [thread:$0]  %s739, 2048, %s5, [#allocation9], 64, 64, 4
    $region33: #{tpu_custom_call.1} parent=1 // pred_fallthru
      _
    // Predicated region
    $region34: #{tpu_custom_call.1} parent=1 // pred_check
      _
    $region35: #{tpu_custom_call.1} parent=1 // pred_check_branch
      %746 = sbr.rel (0) target = $region37
    $region36: #{tpu_custom_call.1} parent=1 // pred_region
      %747 = dma.done [#allocation4], 32
    $region37: #{tpu_custom_call.1} parent=1 // pred_fallthru
      _
    // Predicated region
    $region38: #{tpu_custom_call.1} parent=1 // pred_check
      _
    $region39: #{tpu_custom_call.1} parent=1 // pred_check_branch
      %749 = sbr.rel (0) target = $region41
    $region40: #{tpu_custom_call.1} parent=1 // pred_region
      %750 = dma.done [#allocation9], 2048
    $region41: #{tpu_custom_call.1} parent=1 // pred_fallthru
      _
    %751 = vsyncpa [#allocation3], 1
    %752 = vsyncpa [#allocation6], 1
    %753 = vsyncpa [#allocation4], 1
    %754 = vsyncpa [#allocation9], 1

</llo_original>
